<compile_context>
chip_gen: v5e
topology: v5e:2x2
jax: 0.10.0
libtpu: 0.0.40
codegen_flags: <defaults>
</compile_context>

<pallas_src>
import functools
import numpy as np
import jax
import jax.numpy as jnp
from jax.experimental import pallas as pl
from jax.experimental.pallas import tpu as pltpu

ACT_DIM = 3
INITIAL_STD = 0.1
OBJ_DIM = 256
EEF_DIM = 3
OBS_DIM = EEF_DIM + OBJ_DIM   # 259
HID = 128
OUT_PAD = 8                   # fc3 output lanes padded 3 -> 8 (small HBM writeback)
DEFAULT_MAX_TB = 1024         # upper bound on the batch tile


def _lrelu(x):
    return jnp.where(x > 0, x, 0.01 * x)


def _round_up(x, m):
    return ((x + m - 1) // m) * m


def _device_kind():
    try:
        return jax.devices()[0].device_kind.lower()
    except Exception:
        return ""


def _mxu_is_128(kind=None):
    """Generations with a 128x128 MXU (v2-v5): keep the second layers un-fused."""
    kind = _device_kind() if kind is None else kind
    return any(t in kind for t in ("v2", "v3", "v4", "v5"))


def _num_tensorcores(kind=None):
    """Chips where a 'parallel' grid axis shards across 2 TensorCores."""
    kind = _device_kind() if kind is None else kind
    if "v7" in kind or "v4" in kind or "v5p" in kind:
        return 2
    return 1


# --------------------------------------------------------------------------- #
# Kernels
# --------------------------------------------------------------------------- #
def _actor_pc_kernel_fused(obs_ref, w_f, b_f, w_bd, b_bd,
                           w1, b1, w2, b2, w3, b3, out_ref):
    f32 = jnp.float32
    cd = w_f.dtype  # matmul operand dtype (bf16 or f32); accumulation is f32
    # fused first layers: obs(259) @ [[w_e1, 0],[0, w_o1]] -> [eef1 | obj1]
    h = _lrelu(jnp.dot(obs_ref[...].astype(cd), w_f[...],
                       preferred_element_type=f32) + b_f[...])
    # fused second layers: [eef1|obj1] @ blockdiag(w_e2, w_o2) -> [eef2 | obj2]
    h = _lrelu(jnp.dot(h.astype(cd), w_bd[...],
                       preferred_element_type=f32) + b_bd[...])
    # trunk: fc1 (256->128), fc2 (128->64), fc3 (64->OUT_PAD, no activation)
    x = _lrelu(jnp.dot(h.astype(cd), w1[...], preferred_element_type=f32) + b1[...])
    x = _lrelu(jnp.dot(x.astype(cd), w2[...], preferred_element_type=f32) + b2[...])
    out_ref[...] = jnp.dot(x.astype(cd), w3[...], preferred_element_type=f32) + b3[...]


def _actor_pc_kernel_split(obs_ref, w_f, b_f, w_e2, b_e2, w_o2, b_o2,
                           w1, b1, w2, b2, w3, b3, out_ref):
    """Variant for 128x128-MXU chips: second layers as two separate matmuls."""
    f32 = jnp.float32
    cd = w_f.dtype
    h = _lrelu(jnp.dot(obs_ref[...].astype(cd), w_f[...],
                       preferred_element_type=f32) + b_f[...])
    hc = h.astype(cd)
    eef = _lrelu(jnp.dot(hc[:, :HID], w_e2[...],
                         preferred_element_type=f32) + b_e2[...])
    obj = _lrelu(jnp.dot(hc[:, HID:], w_o2[...],
                         preferred_element_type=f32) + b_o2[...])
    h2 = jnp.concatenate([eef, obj], axis=-1)
    x = _lrelu(jnp.dot(h2.astype(cd), w1[...], preferred_element_type=f32) + b1[...])
    x = _lrelu(jnp.dot(x.astype(cd), w2[...], preferred_element_type=f32) + b2[...])
    out_ref[...] = jnp.dot(x.astype(cd), w3[...], preferred_element_type=f32) + b3[...]


# --------------------------------------------------------------------------- #
# One-time weight preprocessing (hoisted out of the per-call path)
# --------------------------------------------------------------------------- #
def prepare_params(p, *, matmul_dtype=jnp.bfloat16, fuse_second=None):
    if fuse_second is None:
        fuse_second = not _mxu_is_128()
    wd = matmul_dtype
    # fused first layer: rows 0-2 x cols 0-127 = eef_fc1; rows 3-258 x cols
    # 128-255 = obj_fc1 (zeros elsewhere) -> output already in [eef | obj] order.
    w_f = jnp.zeros((OBS_DIM, 2 * HID), jnp.float32)
    w_f = w_f.at[:EEF_DIM, :HID].set(p["w_e1"])
    w_f = w_f.at[EEF_DIM:, HID:].set(p["w_o1"])
    b_f = jnp.concatenate([p["b_e1"], p["b_o1"]], axis=1)          # (1, 256)
    w3_p = jnp.pad(p["w3"], ((0, 0), (0, OUT_PAD - ACT_DIM)))      # (64, 8)
    b3_p = jnp.pad(p["b3"], ((0, 0), (0, OUT_PAD - ACT_DIM)))      # (1, 8)
    prep = {
        "w_f": w_f.astype(wd), "b_f": b_f,
        "w1": p["w1"].astype(wd), "b1": p["b1"],
        "w2": p["w2"].astype(wd), "b2": p["b2"],
        "w3": w3_p.astype(wd), "b3": b3_p,
    }
    if fuse_second:
        z = jnp.zeros((HID, HID), jnp.float32)
        w_bd = jnp.concatenate(
            [jnp.concatenate([p["w_e2"], z], axis=1),
             jnp.concatenate([z, p["w_o2"]], axis=1)], axis=0)     # (256, 256)
        prep["w_bd"] = w_bd.astype(wd)
        prep["b_bd"] = jnp.concatenate([p["b_e2"], p["b_o2"]], axis=1)
    else:
        prep["w_e2"] = p["w_e2"].astype(wd)
        prep["b_e2"] = p["b_e2"]
        prep["w_o2"] = p["w_o2"].astype(wd)
        prep["b_o2"] = p["b_o2"]
    return prep


# --------------------------------------------------------------------------- #
# Forward wrapper
# --------------------------------------------------------------------------- #
@functools.partial(jax.jit, static_argnames=("max_tb",))
def actor_pc_forward(obs, prep, max_tb=DEFAULT_MAX_TB):
    """obs: (B, 259) float32 -> action_mean: (B, ACT_DIM) float32."""
    B = obs.shape[0]
    # Single grid step when the batch fits on 1-TC chips; force >= num_tc steps
    # only where the 'parallel' axis can actually shard across TensorCores.
    n_tc = _num_tensorcores()
    tb = min(max_tb, max(8, _round_up(pl.cdiv(B, n_tc), 8)))
    b_pad = _round_up(B, tb)
    if b_pad != B:  # only touched when B is not already a tile multiple
        obs = jnp.pad(obs, ((0, b_pad - B), (0, 0)))

    fused = "w_bd" in prep
    names = (["w_f", "b_f"]
             + (["w_bd", "b_bd"] if fused else ["w_e2", "b_e2", "w_o2", "b_o2"])
             + ["w1", "b1", "w2", "b2", "w3", "b3"])
    weights = [prep[n] for n in names]
    weight_specs = [pl.BlockSpec(w.shape, lambda i: (0, 0)) for w in weights]
    kernel = _actor_pc_kernel_fused if fused else _actor_pc_kernel_split

    # Advisory cost estimate so XLA schedules surrounding ops around the call.
    second_kn = (2 * HID) * (2 * HID) if fused else 2 * (HID * HID)
    flops_row = 2 * (OBS_DIM * (2 * HID) + second_kn
                     + (2 * HID) * HID + HID * 64 + 64 * OUT_PAD)
    w_bytes = sum(int(np.prod(w.shape)) * w.dtype.itemsize for w in weights)
    cost = pl.CostEstimate(
        flops=int(b_pad) * int(flops_row),
        transcendentals=0,
        bytes_accessed=int(b_pad) * (OBS_DIM + OUT_PAD) * 4 + int(w_bytes))

    out_padded = pl.pallas_call(
        kernel,
        out_shape=jax.ShapeDtypeStruct((b_pad, OUT_PAD), jnp.float32),
        grid_spec=pltpu.PrefetchScalarGridSpec(
            num_scalar_prefetch=0,
            grid=(b_pad // tb,),
            in_specs=[pl.BlockSpec((tb, OBS_DIM), lambda i: (i, 0))] + weight_specs,
            out_specs=pl.BlockSpec((tb, OUT_PAD), lambda i: (i, 0)),
        ),
        compiler_params=pltpu.CompilerParams(
            dimension_semantics=("parallel",)),
        cost_estimate=cost,
    )(obs, *weights)

    return out_padded[:B, :ACT_DIM]


# --------------------------------------------------------------------------- #
# Init + pure-JAX reference (float32)
# --------------------------------------------------------------------------- #
def init_params(key):
    """Deterministic init mimicking nn.Linear's U(-1/sqrt(fan_in), 1/sqrt(fan_in)).

    Weights stored as (in_features, out_features) so y = x @ W + b.
    """
    dims = {
        "o1": (256, 128), "o2": (128, 128),
        "e1": (3, 128),   "e2": (128, 128),
        "1": (256, 128),  "2": (128, 64), "3": (64, ACT_DIM),
    }
    params = {}
    for name, (fin, fout) in dims.items():
        key, kw, kb = jax.random.split(key, 3)
        bound = 1.0 / np.sqrt(fin)
        suffix = name if name in ("1", "2", "3") else "_" + name
        params["w" + suffix] = jax.random.uniform(
            kw, (fin, fout), jnp.float32, -bound, bound)
        params["b" + suffix] = jax.random.uniform(
            kb, (1, fout), jnp.float32, -bound, bound)
    # log_std parameter of the module (used only in .act(), not in forward)
    params["log_std"] = jnp.full((ACT_DIM,), np.log(INITIAL_STD), jnp.float32)
    return params


def reference_forward(obs, p):
    def lrelu(x):
        return jnp.where(x > 0, x, 0.01 * x)
    eef_pose = obs[:, 0:3]
    obj_emb = obs[:, 3:]
    obj = lrelu(obj_emb @ p["w_o1"] + p["b_o1"])
    obj = lrelu(obj @ p["w_o2"] + p["b_o2"])
    eef = lrelu(eef_pose @ p["w_e1"] + p["b_e1"])
    eef = lrelu(eef @ p["w_e2"] + p["b_e2"])
    x = jnp.concatenate([eef, obj], axis=-1)
    x = lrelu(x @ p["w_1"] if "w_1" in p else x @ p["w1"] + p["b1"])
    x = lrelu(x @ p["w2"] + p["b2"])
    return x @ p["w3"] + p["b3"]


if __name__ == "__main__":
    key = jax.random.PRNGKey(0)
    kp, kx1, kx2 = jax.random.split(key, 3)
    params = init_params(kp)

    # (name, prepare_params kwargs, max-abs-diff tolerance vs f32 reference)
    configs = [
        ("f32/fused", dict(matmul_dtype=jnp.float32, fuse_second=True), 1e-2),
        ("f32/split", dict(matmul_dtype=jnp.float32, fuse_second=False), 1e-2),
        ("bf16/auto", dict(matmul_dtype=jnp.bfloat16), 5e-2),
    ]

    # Small shapes: batch=4, plus a non-multiple-of-8 batch (20) to exercise
    # batch padding / tile selection.
    for B, kx in ((4, kx1), (20, kx2)):
        obs = jax.random.normal(kx, (B, OBS_DIM), jnp.float32)
        ref = np.asarray(jax.block_until_ready(reference_forward(obs, params)))
        for name, kw, tol in configs:
            prep = jax.tree_util.tree_map(
                jax.block_until_ready, prepare_params(params, **kw))
            out = jax.block_until_ready(actor_pc_forward(obs, prep))
            assert out.shape == (B, ACT_DIM), (name, out.shape)
            err = float(np.max(np.abs(np.asarray(out) - ref)))
            assert err < tol, (name, B, err)
    print("KERNEL_OK")
</pallas_src>

<mosaic_0001>
module attributes {stable_mosaic.version = 11 : i64} {
  func.func @_actor_pc_kernel_fused(%arg0: i32, %arg1: memref<8x259xf32, #tpu.memory_space<vmem>>, %arg2: memref<259x256xf32, #tpu.memory_space<vmem>>, %arg3: memref<1x256xf32, #tpu.memory_space<vmem>>, %arg4: memref<256x256xf32, #tpu.memory_space<vmem>>, %arg5: memref<1x256xf32, #tpu.memory_space<vmem>>, %arg6: memref<256x128xf32, #tpu.memory_space<vmem>>, %arg7: memref<1x128xf32, #tpu.memory_space<vmem>>, %arg8: memref<128x64xf32, #tpu.memory_space<vmem>>, %arg9: memref<1x64xf32, #tpu.memory_space<vmem>>, %arg10: memref<64x8xf32, #tpu.memory_space<vmem>>, %arg11: memref<1x8xf32, #tpu.memory_space<vmem>>, %arg12: memref<8x8xf32, #tpu.memory_space<vmem>>) attributes {dimension_semantics = [#tpu.dimension_semantics<parallel>], iteration_bounds = array<i64: 1>, scalar_prefetch = 0 : i64, scratch_operands = 0 : i64, tpu.core_type = #tpu.core_type<tc>, window_params = [{transform_indices = @transform_0, window_bounds = array<i64: 8, 259>}, {pipeline_mode = #tpu.pipeline_mode<synchronous>, transform_indices = @transform_1, window_bounds = array<i64: 259, 256>}, {pipeline_mode = #tpu.pipeline_mode<synchronous>, transform_indices = @transform_2, window_bounds = array<i64: 1, 256>}, {pipeline_mode = #tpu.pipeline_mode<synchronous>, transform_indices = @transform_3, window_bounds = array<i64: 256, 256>}, {pipeline_mode = #tpu.pipeline_mode<synchronous>, transform_indices = @transform_4, window_bounds = array<i64: 1, 256>}, {pipeline_mode = #tpu.pipeline_mode<synchronous>, transform_indices = @transform_5, window_bounds = array<i64: 256, 128>}, {pipeline_mode = #tpu.pipeline_mode<synchronous>, transform_indices = @transform_6, window_bounds = array<i64: 1, 128>}, {pipeline_mode = #tpu.pipeline_mode<synchronous>, transform_indices = @transform_7, window_bounds = array<i64: 128, 64>}, {pipeline_mode = #tpu.pipeline_mode<synchronous>, transform_indices = @transform_8, window_bounds = array<i64: 1, 64>}, {pipeline_mode = #tpu.pipeline_mode<synchronous>, transform_indices = @transform_9, window_bounds = array<i64: 64, 8>}, {pipeline_mode = #tpu.pipeline_mode<synchronous>, transform_indices = @transform_10, window_bounds = array<i64: 1, 8>}, {transform_indices = @transform_11, window_bounds = array<i64: 8, 8>}]} {
    %c0 = arith.constant 0 : index
    %c0_0 = arith.constant 0 : index
    %0 = vector.load %arg1[%c0, %c0_0] : memref<8x259xf32, #tpu.memory_space<vmem>>, vector<8x259xf32>
    %c0_1 = arith.constant 0 : index
    %c0_2 = arith.constant 0 : index
    %1 = vector.load %arg2[%c0_1, %c0_2] : memref<259x256xf32, #tpu.memory_space<vmem>>, vector<259x256xf32>
    %cst = arith.constant dense<0.000000e+00> : vector<8x256xf32>
    %2 = tpu.matmul %0, %1, %cst {dimension_numbers = #tpu.dot_dimension_numbers<[1], [0], [0], [1], [0, 0, 1, 1], [], []>} : vector<8x259xf32>, vector<259x256xf32>, vector<8x256xf32> -> vector<8x256xf32>
    %c0_3 = arith.constant 0 : index
    %c0_4 = arith.constant 0 : index
    %3 = vector.load %arg3[%c0_3, %c0_4] : memref<1x256xf32, #tpu.memory_space<vmem>>, vector<1x256xf32>
    %4 = vector.broadcast %3 : vector<1x256xf32> to vector<8x256xf32>
    %5 = arith.addf %2, %4 : vector<8x256xf32>
    %cst_5 = arith.constant 0.000000e+00 : f32
    %6 = vector.broadcast %cst_5 : f32 to vector<8x256xf32>
    %7 = arith.cmpf ogt, %5, %6 : vector<8x256xf32>
    %cst_6 = arith.constant 0.00999999977 : f32
    %8 = vector.broadcast %cst_6 : f32 to vector<8x256xf32>
    %9 = arith.mulf %8, %5 : vector<8x256xf32>
    %10 = arith.select %7, %5, %9 : vector<8x256xi1>, vector<8x256xf32>
    %c0_7 = arith.constant 0 : index
    %c0_8 = arith.constant 0 : index
    %11 = vector.load %arg4[%c0_7, %c0_8] : memref<256x256xf32, #tpu.memory_space<vmem>>, vector<256x256xf32>
    %cst_9 = arith.constant dense<0.000000e+00> : vector<8x256xf32>
    %12 = tpu.matmul %10, %11, %cst_9 {dimension_numbers = #tpu.dot_dimension_numbers<[1], [0], [0], [1], [0, 0, 1, 1], [], []>} : vector<8x256xf32>, vector<256x256xf32>, vector<8x256xf32> -> vector<8x256xf32>
    %c0_10 = arith.constant 0 : index
    %c0_11 = arith.constant 0 : index
    %13 = vector.load %arg5[%c0_10, %c0_11] : memref<1x256xf32, #tpu.memory_space<vmem>>, vector<1x256xf32>
    %14 = vector.broadcast %13 : vector<1x256xf32> to vector<8x256xf32>
    %15 = arith.addf %12, %14 : vector<8x256xf32>
    %cst_12 = arith.constant 0.000000e+00 : f32
    %16 = vector.broadcast %cst_12 : f32 to vector<8x256xf32>
    %17 = arith.cmpf ogt, %15, %16 : vector<8x256xf32>
    %cst_13 = arith.constant 0.00999999977 : f32
    %18 = vector.broadcast %cst_13 : f32 to vector<8x256xf32>
    %19 = arith.mulf %18, %15 : vector<8x256xf32>
    %20 = arith.select %17, %15, %19 : vector<8x256xi1>, vector<8x256xf32>
    %c0_14 = arith.constant 0 : index
    %c0_15 = arith.constant 0 : index
    %21 = vector.load %arg6[%c0_14, %c0_15] : memref<256x128xf32, #tpu.memory_space<vmem>>, vector<256x128xf32>
    %cst_16 = arith.constant dense<0.000000e+00> : vector<8x128xf32>
    %22 = tpu.matmul %20, %21, %cst_16 {dimension_numbers = #tpu.dot_dimension_numbers<[1], [0], [0], [1], [0, 0, 1, 1], [], []>} : vector<8x256xf32>, vector<256x128xf32>, vector<8x128xf32> -> vector<8x128xf32>
    %c0_17 = arith.constant 0 : index
    %c0_18 = arith.constant 0 : index
    %23 = vector.load %arg7[%c0_17, %c0_18] : memref<1x128xf32, #tpu.memory_space<vmem>>, vector<1x128xf32>
    %24 = vector.broadcast %23 : vector<1x128xf32> to vector<8x128xf32>
    %25 = arith.addf %22, %24 : vector<8x128xf32>
    %cst_19 = arith.constant 0.000000e+00 : f32
    %26 = vector.broadcast %cst_19 : f32 to vector<8x128xf32>
    %27 = arith.cmpf ogt, %25, %26 : vector<8x128xf32>
    %cst_20 = arith.constant 0.00999999977 : f32
    %28 = vector.broadcast %cst_20 : f32 to vector<8x128xf32>
    %29 = arith.mulf %28, %25 : vector<8x128xf32>
    %30 = arith.select %27, %25, %29 : vector<8x128xi1>, vector<8x128xf32>
    %c0_21 = arith.constant 0 : index
    %c0_22 = arith.constant 0 : index
    %31 = vector.load %arg8[%c0_21, %c0_22] : memref<128x64xf32, #tpu.memory_space<vmem>>, vector<128x64xf32>
    %cst_23 = arith.constant dense<0.000000e+00> : vector<8x64xf32>
    %32 = tpu.matmul %30, %31, %cst_23 {dimension_numbers = #tpu.dot_dimension_numbers<[1], [0], [0], [1], [0, 0, 1, 1], [], []>} : vector<8x128xf32>, vector<128x64xf32>, vector<8x64xf32> -> vector<8x64xf32>
    %c0_24 = arith.constant 0 : index
    %c0_25 = arith.constant 0 : index
    %33 = vector.load %arg9[%c0_24, %c0_25] : memref<1x64xf32, #tpu.memory_space<vmem>>, vector<1x64xf32>
    %34 = vector.broadcast %33 : vector<1x64xf32> to vector<8x64xf32>
    %35 = arith.addf %32, %34 : vector<8x64xf32>
    %cst_26 = arith.constant 0.000000e+00 : f32
    %36 = vector.broadcast %cst_26 : f32 to vector<8x64xf32>
    %37 = arith.cmpf ogt, %35, %36 : vector<8x64xf32>
    %cst_27 = arith.constant 0.00999999977 : f32
    %38 = vector.broadcast %cst_27 : f32 to vector<8x64xf32>
    %39 = arith.mulf %38, %35 : vector<8x64xf32>
    %40 = arith.select %37, %35, %39 : vector<8x64xi1>, vector<8x64xf32>
    %c0_28 = arith.constant 0 : index
    %c0_29 = arith.constant 0 : index
    %41 = vector.load %arg10[%c0_28, %c0_29] : memref<64x8xf32, #tpu.memory_space<vmem>>, vector<64x8xf32>
    %cst_30 = arith.constant dense<0.000000e+00> : vector<8x8xf32>
    %42 = tpu.matmul %40, %41, %cst_30 {dimension_numbers = #tpu.dot_dimension_numbers<[1], [0], [0], [1], [0, 0, 1, 1], [], []>} : vector<8x64xf32>, vector<64x8xf32>, vector<8x8xf32> -> vector<8x8xf32>
    %c0_31 = arith.constant 0 : index
    %c0_32 = arith.constant 0 : index
    %43 = vector.load %arg11[%c0_31, %c0_32] : memref<1x8xf32, #tpu.memory_space<vmem>>, vector<1x8xf32>
    %44 = vector.broadcast %43 : vector<1x8xf32> to vector<8x8xf32>
    %45 = arith.addf %42, %44 : vector<8x8xf32>
    %c0_33 = arith.constant 0 : index
    %c0_34 = arith.constant 0 : index
    %46 = vector.load %arg12[%c0_33, %c0_34] : memref<8x8xf32, #tpu.memory_space<vmem>>, vector<8x8xf32>
    tpu.vector_store %arg12[%c0_33, %c0_34], %45 {strides = array<i32>} : memref<8x8xf32, #tpu.memory_space<vmem>>, vector<8x8xf32>,
    return
  }
  func.func @transform_0(%arg0: i32) -> (i32, i32) {
    %c0_i32 = arith.constant 0 : i32
    %c0_i32_0 = arith.constant 0 : i32
    return %arg0, %c0_i32 : i32, i32
  }
  func.func @transform_1(%arg0: i32) -> (i32, i32) {
    %c0_i32 = arith.constant 0 : i32
    %c0_i32_0 = arith.constant 0 : i32
    %c0_i32_1 = arith.constant 0 : i32
    return %c0_i32, %c0_i32_0 : i32, i32
  }
  func.func @transform_2(%arg0: i32) -> (i32, i32) {
    %c0_i32 = arith.constant 0 : i32
    %c0_i32_0 = arith.constant 0 : i32
    %c0_i32_1 = arith.constant 0 : i32
    return %c0_i32, %c0_i32_0 : i32, i32
  }
  func.func @transform_3(%arg0: i32) -> (i32, i32) {
    %c0_i32 = arith.constant 0 : i32
    %c0_i32_0 = arith.constant 0 : i32
    %c0_i32_1 = arith.constant 0 : i32
    return %c0_i32, %c0_i32_0 : i32, i32
  }
  func.func @transform_4(%arg0: i32) -> (i32, i32) {
    %c0_i32 = arith.constant 0 : i32
    %c0_i32_0 = arith.constant 0 : i32
    %c0_i32_1 = arith.constant 0 : i32
    return %c0_i32, %c0_i32_0 : i32, i32
  }
  func.func @transform_5(%arg0: i32) -> (i32, i32) {
    %c0_i32 = arith.constant 0 : i32
    %c0_i32_0 = arith.constant 0 : i32
    %c0_i32_1 = arith.constant 0 : i32
    return %c0_i32, %c0_i32_0 : i32, i32
  }
  func.func @transform_6(%arg0: i32) -> (i32, i32) {
    %c0_i32 = arith.constant 0 : i32
    %c0_i32_0 = arith.constant 0 : i32
    %c0_i32_1 = arith.constant 0 : i32
    return %c0_i32, %c0_i32_0 : i32, i32
  }
  func.func @transform_7(%arg0: i32) -> (i32, i32) {
    %c0_i32 = arith.constant 0 : i32
    %c0_i32_0 = arith.constant 0 : i32
    %c0_i32_1 = arith.constant 0 : i32
    return %c0_i32, %c0_i32_0 : i32, i32
  }
  func.func @transform_8(%arg0: i32) -> (i32, i32) {
    %c0_i32 = arith.constant 0 : i32
    %c0_i32_0 = arith.constant 0 : i32
    %c0_i32_1 = arith.constant 0 : i32
    return %c0_i32, %c0_i32_0 : i32, i32
  }
  func.func @transform_9(%arg0: i32) -> (i32, i32) {
    %c0_i32 = arith.constant 0 : i32
    %c0_i32_0 = arith.constant 0 : i32
    %c0_i32_1 = arith.constant 0 : i32
    return %c0_i32, %c0_i32_0 : i32, i32
  }
  func.func @transform_10(%arg0: i32) -> (i32, i32) {
    %c0_i32 = arith.constant 0 : i32
    %c0_i32_0 = arith.constant 0 : i32
    %c0_i32_1 = arith.constant 0 : i32
    return %c0_i32, %c0_i32_0 : i32, i32
  }
  func.func @transform_11(%arg0: i32) -> (i32, i32) {
    %c0_i32 = arith.constant 0 : i32
    %c0_i32_0 = arith.constant 0 : i32
    return %arg0, %c0_i32 : i32, i32
  }
}

</mosaic_0001>

<llo_original>
// kernel: actor_pc_forward.1
$region0: #{actor_pc_forward.1}
  #allocation0 [shape = 'u32[]', space=smem, size = 0x4, offset = 0x4, fixed_abs, tag = 'smem constant byte address 0x4 - core index']
  #allocation1 [shape = 'u32[72,128]{1,0:T(1,128)}', space=vmem, size = 0x9000, scoped, tag = 'internal scratch']
  %s0 = inlined_call_operand.vmem [shape: f32[8,259], index: 0, kind: input, shape index: {}]
  %s1 = inlined_call_operand.hbm [shape: f32[259,256], index: 1, kind: input, shape index: {}]
  %s2 = inlined_call_operand.vmem [shape: f32[1,256], index: 2, kind: input, shape index: {}]
  %s3 = inlined_call_operand.hbm [shape: f32[256,256], index: 3, kind: input, shape index: {}]
  %s4 = inlined_call_operand.vmem [shape: f32[1,256], index: 4, kind: input, shape index: {}]
  %s5 = inlined_call_operand.vmem [shape: f32[256,128], index: 5, kind: input, shape index: {}]
  %s6 = inlined_call_operand.vmem [shape: f32[1,128], index: 6, kind: input, shape index: {}]
  %s7 = inlined_call_operand.vmem [shape: f32[128,64], index: 7, kind: input, shape index: {}]
  %s8 = inlined_call_operand.vmem [shape: f32[1,64], index: 8, kind: input, shape index: {}]
  %s9 = inlined_call_operand.vmem [shape: f32[64,8], index: 9, kind: input, shape index: {}]
  %s10 = inlined_call_operand.vmem [shape: f32[1,8], index: 10, kind: input, shape index: {}]
  %s11 = inlined_call_operand.vmem [shape: f32[8,8], index: 11, kind: output, shape index: {}]
  %s12 = sld [smem:[#allocation0]]
  $region62: #{actor_pc_forward.1} parent=0
    _
  %s14 = ssub.s32 1, %s12
  %s15 = scalar_select 0, %s14, %s12
  $region1: #{actor_pc_forward.1} parent=0
    #allocation2 [shape = 'u8[270336]{0}', space=vmem, size = 0x42000, scoped, tag = 'input window, operand 1, single buffered']
    #allocation3 [shape = 's32[1]{0}', space=sflag, size = 0x4, scoped, tag = 'scoped memory for actor_pc_forward.1']
    #allocation4 [shape = 'u8[262144]{0}', space=vmem, size = 0x40000, scoped, tag = 'input window, operand 3, single buffered']
    #allocation5 [shape = 's32[1]{0}', space=sflag, size = 0x4, scoped, tag = 'scoped memory for actor_pc_forward.1']
    %16 = vsyncpa [#allocation3], 0
    %17 = vsyncpa [#allocation5], 0
    // Predicated region
    $region2: #{actor_pc_forward.1} parent=1 // pred_check
      _
    $region3: #{actor_pc_forward.1} parent=1 // pred_check_branch
      %19 = sbr.rel (0) target = $region5
    $region4: #{actor_pc_forward.1} parent=1 // pred_region
      _
    $region5: #{actor_pc_forward.1} parent=1 // pred_fallthru
      _
    // Predicated region
    $region6: #{actor_pc_forward.1} parent=1 // pred_check
      _
    $region7: #{actor_pc_forward.1} parent=1 // pred_check_branch
      %21 = sbr.rel (0) target = $region9
    $region8: #{actor_pc_forward.1} parent=1 // pred_region
      %23 = vsyncadd [#allocation3], 0
      %s24 = sshll.u32 %s1, 4
      %s25 = int_to_ptr.hbm [resolvable:$true] %s24
      %s26 = sshll.u32 [#allocation2], 4
      %s27 = int_to_ptr.vmem [resolvable:$true] %s26
      %32 = dma.hbm_to_vmem [thread:$0]  %s25, 8448, %s27, [#allocation3], 256, 256, 16
    $region9: #{actor_pc_forward.1} parent=1 // pred_fallthru
      _
    // Predicated region
    $region10: #{actor_pc_forward.1} parent=1 // pred_check
      _
    $region11: #{actor_pc_forward.1} parent=1 // pred_check_branch
      %34 = sbr.rel (0) target = $region13
    $region12: #{actor_pc_forward.1} parent=1 // pred_region
      _
    $region13: #{actor_pc_forward.1} parent=1 // pred_fallthru
      _
    // Predicated region
    $region14: #{actor_pc_forward.1} parent=1 // pred_check
      _
    $region15: #{actor_pc_forward.1} parent=1 // pred_check_branch
      %36 = sbr.rel (0) target = $region17
    $region16: #{actor_pc_forward.1} parent=1 // pred_region
      %38 = vsyncadd [#allocation5], 0
      %s39 = sshll.u32 %s3, 4
      %s40 = int_to_ptr.hbm [resolvable:$true] %s39
      %s41 = sshll.u32 [#allocation4], 4
      %s42 = int_to_ptr.vmem [resolvable:$true] %s41
      %47 = dma.hbm_to_vmem [thread:$0]  %s40, 8192, %s42, [#allocation5], 256, 256, 16
    $region17: #{actor_pc_forward.1} parent=1 // pred_fallthru
      _
    // Predicated region
    $region18: #{actor_pc_forward.1} parent=1 // pred_check
      _
    $region19: #{actor_pc_forward.1} parent=1 // pred_check_branch
      %49 = sbr.rel (0) target = $region21
    $region20: #{actor_pc_forward.1} parent=1 // pred_region
      _
    $region21: #{actor_pc_forward.1} parent=1 // pred_fallthru
      _
    // Predicated region
    $region22: #{actor_pc_forward.1} parent=1 // pred_check
      _
    $region23: #{actor_pc_forward.1} parent=1 // pred_check_branch
      %51 = sbr.rel (0) target = $region25
    $region24: #{actor_pc_forward.1} parent=1 // pred_region
      _
    $region25: #{actor_pc_forward.1} parent=1 // pred_fallthru
      _
    // Predicated region
    $region26: #{actor_pc_forward.1} parent=1 // pred_check
      _
    $region27: #{actor_pc_forward.1} parent=1 // pred_check_branch
      %53 = sbr.rel (0) target = $region29
    $region28: #{actor_pc_forward.1} parent=1 // pred_region
      _
    $region29: #{actor_pc_forward.1} parent=1 // pred_fallthru
      _
    // Predicated region
    $region30: #{actor_pc_forward.1} parent=1 // pred_check
      _
    $region31: #{actor_pc_forward.1} parent=1 // pred_check_branch
      %55 = sbr.rel (0) target = $region33
    $region32: #{actor_pc_forward.1} parent=1 // pred_region
      _
    $region33: #{actor_pc_forward.1} parent=1 // pred_fallthru
      _
    // Predicated region
    $region34: #{actor_pc_forward.1} parent=1 // pred_check
      _
    $region35: #{actor_pc_forward.1} parent=1 // pred_check_branch
      %57 = sbr.rel (0) target = $region37
    $region36: #{actor_pc_forward.1} parent=1 // pred_region
      _
    $region37: #{actor_pc_forward.1} parent=1 // pred_fallthru
      _
    // Predicated region
    $region38: #{actor_pc_forward.1} parent=1 // pred_check
      _
    $region39: #{actor_pc_forward.1} parent=1 // pred_check_branch
      %59 = sbr.rel (0) target = $region41
    $region40: #{actor_pc_forward.1} parent=1 // pred_region
      _
    $region41: #{actor_pc_forward.1} parent=1 // pred_fallthru
      _
    // Predicated region
    $region42: #{actor_pc_forward.1} parent=1 // pred_check
      _
    $region43: #{actor_pc_forward.1} parent=1 // pred_check_branch
      %61 = sbr.rel (0) target = $region45
    $region44: #{actor_pc_forward.1} parent=1 // pred_region
      _
    $region45: #{actor_pc_forward.1} parent=1 // pred_fallthru
      _
    // Predicated region
    $region46: #{actor_pc_forward.1} parent=1 // pred_check
      _
    $region47: #{actor_pc_forward.1} parent=1 // pred_check_branch
      %63 = sbr.rel (0) target = $region49
    $region48: #{actor_pc_forward.1} parent=1 // pred_region
      %65 = dma.done [#allocation3], 8448
    $region49: #{actor_pc_forward.1} parent=1 // pred_fallthru
      _
    // Predicated region
    $region50: #{actor_pc_forward.1} parent=1 // pred_check
      _
    $region51: #{actor_pc_forward.1} parent=1 // pred_check_branch
      %67 = sbr.rel (0) target = $region53
    $region52: #{actor_pc_forward.1} parent=1 // pred_region
      %69 = dma.done [#allocation5], 8192
    $region53: #{actor_pc_forward.1} parent=1 // pred_fallthru
      _
    %v70 = vld [vmem:[%s0] sm:$0xff]
    %v71 = vld [vmem:[%s0 + $0x8] sm:$0xff]
    %v72 = vld [vmem:[%s0 + $0x10] sm:$0xff]
    %v73 = vld [vmem:[#allocation2] sm:$0xff]
    %v74 = vld [vmem:[#allocation2 + $0x8] sm:$0xff]
    %v75 = vld [vmem:[#allocation2 + $0x10] sm:$0xff]
    %v76 = vld [vmem:[#allocation2 + $0x18] sm:$0xff]
    %v77 = vld [vmem:[#allocation2 + $0x20] sm:$0xff]
    %v78 = vld [vmem:[#allocation2 + $0x28] sm:$0xff]
    %v79 = vld [vmem:[#allocation2 + $0x30] sm:$0xff]
    %v80 = vld [vmem:[#allocation2 + $0x38] sm:$0xff]
    %v81 = vld [vmem:[#allocation2 + $0x40] sm:$0xff]
    %v82 = vld [vmem:[#allocation2 + $0x48] sm:$0xff]
    %v83 = vld [vmem:[#allocation2 + $0x50] sm:$0xff]
    %v84 = vld [vmem:[#allocation2 + $0x58] sm:$0xff]
    %v85 = vld [vmem:[#allocation2 + $0x60] sm:$0xff]
    %v86 = vld [vmem:[#allocation2 + $0x68] sm:$0xff]
    %v87 = vld [vmem:[#allocation2 + $0x70] sm:$0xff]
    %v88 = vld [vmem:[#allocation2 + $0x78] sm:$0xff]
    %v89 = vld [vmem:[#allocation2 + $0x80] sm:$0xff]
    %v90 = vld [vmem:[#allocation2 + $0x88] sm:$0xff]
    %v91 = vld [vmem:[#allocation2 + $0x90] sm:$0xff]
    %v92 = vld [vmem:[#allocation2 + $0x98] sm:$0xff]
    %v93 = vld [vmem:[#allocation2 + $0xa0] sm:$0xff]
    %v94 = vld [vmem:[#allocation2 + $0xa8] sm:$0xff]
    %v95 = vld [vmem:[#allocation2 + $0xb0] sm:$0xff]
    %v96 = vld [vmem:[#allocation2 + $0xb8] sm:$0xff]
    %v97 = vld [vmem:[#allocation2 + $0xc0] sm:$0xff]
    %v98 = vld [vmem:[#allocation2 + $0xc8] sm:$0xff]
    %v99 = vld [vmem:[#allocation2 + $0xd0] sm:$0xff]
    %v100 = vld [vmem:[#allocation2 + $0xd8] sm:$0xff]
    %v101 = vld [vmem:[#allocation2 + $0xe0] sm:$0xff]
    %v102 = vld [vmem:[#allocation2 + $0xe8] sm:$0xff]
    %v103 = vld [vmem:[#allocation2 + $0xf0] sm:$0xff]
    %v104 = vld [vmem:[#allocation2 + $0xf8] sm:$0xff]
    %v105 = vld [vmem:[#allocation2 + $0x100] sm:$0xff]
    %v106 = vld [vmem:[#allocation2 + $0x108] sm:$0xff]
    %v107 = vld [vmem:[#allocation2 + $0x110] sm:$0xff]
    %v108 = vld [vmem:[#allocation2 + $0x118] sm:$0xff]
    %v109 = vld [vmem:[#allocation2 + $0x120] sm:$0xff]
    %v110 = vld [vmem:[#allocation2 + $0x128] sm:$0xff]
    %v111 = vld [vmem:[#allocation2 + $0x130] sm:$0xff]
    %v112 = vld [vmem:[#allocation2 + $0x138] sm:$0xff]
    %v113 = vld [vmem:[#allocation2 + $0x140] sm:$0xff]
    %v114 = vld [vmem:[#allocation2 + $0x148] sm:$0xff]
    %v115 = vld [vmem:[#allocation2 + $0x150] sm:$0xff]
    %v116 = vld [vmem:[#allocation2 + $0x158] sm:$0xff]
    %v117 = vld [vmem:[#allocation2 + $0x160] sm:$0xff]
    %v118 = vld [vmem:[#allocation2 + $0x168] sm:$0xff]
    %v119 = vld [vmem:[#allocation2 + $0x170] sm:$0xff]
    %v120 = vld [vmem:[#allocation2 + $0x178] sm:$0xff]
    %v121 = vld [vmem:[#allocation2 + $0x180] sm:$0xff]
    %v122 = vld [vmem:[#allocation2 + $0x188] sm:$0xff]
    %v123 = vld [vmem:[#allocation2 + $0x190] sm:$0xff]
    %v124 = vld [vmem:[#allocation2 + $0x198] sm:$0xff]
    %v125 = vld [vmem:[#allocation2 + $0x1a0] sm:$0xff]
    %v126 = vld [vmem:[#allocation2 + $0x1a8] sm:$0xff]
    %v127 = vld [vmem:[#allocation2 + $0x1b0] sm:$0xff]
    %v128 = vld [vmem:[#allocation2 + $0x1b8] sm:$0xff]
    %v129 = vld [vmem:[#allocation2 + $0x1c0] sm:$0xff]
    %v130 = vld [vmem:[#allocation2 + $0x1c8] sm:$0xff]
    %v131 = vld [vmem:[#allocation2 + $0x1d0] sm:$0xff]
    %v132 = vld [vmem:[#allocation2 + $0x1d8] sm:$0xff]
    %v133 = vld [vmem:[#allocation2 + $0x1e0] sm:$0xff]
    %v134 = vld [vmem:[#allocation2 + $0x1e8] sm:$0xff]
    %v135 = vld [vmem:[#allocation2 + $0x1f0] sm:$0xff]
    %v136 = vld [vmem:[#allocation2 + $0x1f8] sm:$0xff]
    %v137 = vld [vmem:[#allocation2 + $0x200] sm:$0x7]
    %v138 = vld [vmem:[#allocation2 + $0x208] sm:$0x7]
    %v139 = vld [vmem:[%s2] sm:$0x3]
    %v141 = vperm.slane %v139, 0
    %v142 = vperm.slane %v139, 1
    %vm145 = vcmask 23552
    %v147 = vsel %vm145, %v72, 0
    %vm149 = vcmask 1042432
    %v151 = vsel %vm149, %v137, 0
    %v154 = vsel %vm149, %v138, 0
    %156 = vmatpush.msra.mxu0 %v103
    %157 = vmatpush.msra.mxu0 %v101
    %158 = vmatpush.msra.mxu0 %v99
    %159 = vmatpush.msra.mxu0 %v97
    %160 = vmatpush.msra.mxu0 %v95
    %161 = vmatpush.msra.mxu0 %v93
    %162 = vmatpush.msra.mxu0 %v91
    %163 = vmatpush.msra.mxu0 %v89
    %164 = vmatpush.msra.mxu0 %v87
    %165 = vmatpush.msra.mxu0 %v85
    %166 = vmatpush.msra.mxu0 %v83
    %167 = vmatpush.msra.mxu0 %v81
    %168 = vmatpush.msra.mxu0 %v79
    %169 = vmatpush.msra.mxu0 %v77
    %170 = vmatpush.msra.mxu0 %v75
    %171 = vmatpush.msra.mxu0 %v73
    %172 = vmatmul.f32.gmra.mxu0 %v70
    %v173 = vpop.f32.mrf.mxu0
    %v174 = vadd.f32 %v141, %v173
    %175 = vdwg.mxu0
    %176 = vmatpush.msra.mxu0 %v135
    %177 = vmatpush.msra.mxu0 %v133
    %178 = vmatpush.msra.mxu0 %v131
    %179 = vmatpush.msra.mxu0 %v129
    %180 = vmatpush.msra.mxu0 %v127
    %181 = vmatpush.msra.mxu0 %v125
    %182 = vmatpush.msra.mxu0 %v123
    %183 = vmatpush.msra.mxu0 %v121
    %184 = vmatpush.msra.mxu0 %v119
    %185 = vmatpush.msra.mxu0 %v117
    %186 = vmatpush.msra.mxu0 %v115
    %187 = vmatpush.msra.mxu0 %v113
    %188 = vmatpush.msra.mxu0 %v111
    %189 = vmatpush.msra.mxu0 %v109
    %190 = vmatpush.msra.mxu0 %v107
    %191 = vmatpush.msra.mxu0 %v105
    %192 = vmatmul.f32.gmra.mxu0 %v71
    %v193 = vpop.f32.mrf.mxu0
    %v194 = vadd.f32 %v174, %v193
    %195 = vdwg.mxu0
    %196 = vmatpush.msra.mxu0 0.0
    %197 = vmatpush.msra.mxu0 0.0
    %198 = vmatpush.msra.mxu0 0.0
    %199 = vmatpush.msra.mxu0 0.0
    %200 = vmatpush.msra.mxu0 0.0
    %201 = vmatpush.msra.mxu0 0.0
    %202 = vmatpush.msra.mxu0 0.0
    %203 = vmatpush.msra.mxu0 0.0
    %204 = vmatpush.msra.mxu0 0.0
    %205 = vmatpush.msra.mxu0 0.0
    %206 = vmatpush.msra.mxu0 0.0
    %207 = vmatpush.msra.mxu0 0.0
    %208 = vmatpush.msra.mxu0 0.0
    %209 = vmatpush.msra.mxu0 0.0
    %210 = vmatpush.msra.mxu0 0.0
    %211 = vmatpush.msra.mxu0 %v151
    %212 = vmatmul.f32.gmra.mxu0 %v147
    %v213 = vpop.f32.mrf.mxu0
    %v214 = vadd.f32 %v194, %v213
    %215 = vdwg.mxu0
    %216 = vmatpush.msra.mxu0 %v104
    %217 = vmatpush.msra.mxu0 %v102
    %218 = vmatpush.msra.mxu0 %v100
    %219 = vmatpush.msra.mxu0 %v98
    %220 = vmatpush.msra.mxu0 %v96
    %221 = vmatpush.msra.mxu0 %v94
    %222 = vmatpush.msra.mxu0 %v92
    %223 = vmatpush.msra.mxu0 %v90
    %224 = vmatpush.msra.mxu0 %v88
    %225 = vmatpush.msra.mxu0 %v86
    %226 = vmatpush.msra.mxu0 %v84
    %227 = vmatpush.msra.mxu0 %v82
    %228 = vmatpush.msra.mxu0 %v80
    %229 = vmatpush.msra.mxu0 %v78
    %230 = vmatpush.msra.mxu0 %v76
    %231 = vmatpush.msra.mxu0 %v74
    %232 = vmatmul.f32.gmra.mxu0 %v70
    %v233 = vpop.f32.mrf.mxu0
    %v234 = vadd.f32 %v142, %v233
    %235 = vdwg.mxu0
    %236 = vmatpush.msra.mxu0 %v136
    %237 = vmatpush.msra.mxu0 %v134
    %238 = vmatpush.msra.mxu0 %v132
    %239 = vmatpush.msra.mxu0 %v130
    %240 = vmatpush.msra.mxu0 %v128
    %241 = vmatpush.msra.mxu0 %v126
    %242 = vmatpush.msra.mxu0 %v124
    %243 = vmatpush.msra.mxu0 %v122
    %244 = vmatpush.msra.mxu0 %v120
    %245 = vmatpush.msra.mxu0 %v118
    %246 = vmatpush.msra.mxu0 %v116
    %247 = vmatpush.msra.mxu0 %v114
    %248 = vmatpush.msra.mxu0 %v112
    %249 = vmatpush.msra.mxu0 %v110
    %250 = vmatpush.msra.mxu0 %v108
    %251 = vmatpush.msra.mxu0 %v106
    %252 = vmatmul.f32.gmra.mxu0 %v71
    %v253 = vpop.f32.mrf.mxu0
    %v254 = vadd.f32 %v234, %v253
    %255 = vdwg.mxu0
    %256 = vmatpush.msra.mxu0 0.0
    %257 = vmatpush.msra.mxu0 0.0
    %258 = vmatpush.msra.mxu0 0.0
    %259 = vmatpush.msra.mxu0 0.0
    %260 = vmatpush.msra.mxu0 0.0
    %261 = vmatpush.msra.mxu0 0.0
    %262 = vmatpush.msra.mxu0 0.0
    %263 = vmatpush.msra.mxu0 0.0
    %264 = vmatpush.msra.mxu0 0.0
    %265 = vmatpush.msra.mxu0 0.0
    %266 = vmatpush.msra.mxu0 0.0
    %267 = vmatpush.msra.mxu0 0.0
    %268 = vmatpush.msra.mxu0 0.0
    %269 = vmatpush.msra.mxu0 0.0
    %270 = vmatpush.msra.mxu0 0.0
    %271 = vmatpush.msra.mxu0 %v154
    %272 = vmatmul.f32.gmra.mxu0 %v147
    %v273 = vpop.f32.mrf.mxu0
    %v274 = vadd.f32 %v254, %v273
    %275 = vdwg.mxu0
    %vm276 = vcmp.gt.f32.partialorder %v214, 0.0
    %vm277 = vcmp.gt.f32.partialorder %v274, 0.0
    %v278 = vmul.f32 %v214, 0.01
    %v279 = vmul.f32 %v274, 0.01
    %v280 = vsel %vm276, %v214, %v278
    %v281 = vsel %vm277, %v274, %v279
    %v282 = vld [vmem:[#allocation4] sm:$0xff]
    %v283 = vld [vmem:[#allocation4 + $0x8] sm:$0xff]
    %v284 = vld [vmem:[#allocation4 + $0x10] sm:$0xff]
    %v285 = vld [vmem:[#allocation4 + $0x18] sm:$0xff]
    %v286 = vld [vmem:[#allocation4 + $0x20] sm:$0xff]
    %v287 = vld [vmem:[#allocation4 + $0x28] sm:$0xff]
    %v288 = vld [vmem:[#allocation4 + $0x30] sm:$0xff]
    %v289 = vld [vmem:[#allocation4 + $0x38] sm:$0xff]
    %v290 = vld [vmem:[#allocation4 + $0x40] sm:$0xff]
    %v291 = vld [vmem:[#allocation4 + $0x48] sm:$0xff]
    %v292 = vld [vmem:[#allocation4 + $0x50] sm:$0xff]
    %v293 = vld [vmem:[#allocation4 + $0x58] sm:$0xff]
    %v294 = vld [vmem:[#allocation4 + $0x60] sm:$0xff]
    %v295 = vld [vmem:[#allocation4 + $0x68] sm:$0xff]
    %v296 = vld [vmem:[#allocation4 + $0x70] sm:$0xff]
    %v297 = vld [vmem:[#allocation4 + $0x78] sm:$0xff]
    %v298 = vld [vmem:[#allocation4 + $0x80] sm:$0xff]
    %v299 = vld [vmem:[#allocation4 + $0x88] sm:$0xff]
    %v300 = vld [vmem:[#allocation4 + $0x90] sm:$0xff]
    %v301 = vld [vmem:[#allocation4 + $0x98] sm:$0xff]
    %v302 = vld [vmem:[#allocation4 + $0xa0] sm:$0xff]
    %v303 = vld [vmem:[#allocation4 + $0xa8] sm:$0xff]
    %v304 = vld [vmem:[#allocation4 + $0xb0] sm:$0xff]
    %v305 = vld [vmem:[#allocation4 + $0xb8] sm:$0xff]
    %v306 = vld [vmem:[#allocation4 + $0xc0] sm:$0xff]
    %v307 = vld [vmem:[#allocation4 + $0xc8] sm:$0xff]
    %v308 = vld [vmem:[#allocation4 + $0xd0] sm:$0xff]
    %v309 = vld [vmem:[#allocation4 + $0xd8] sm:$0xff]
    %v310 = vld [vmem:[#allocation4 + $0xe0] sm:$0xff]
    %v311 = vld [vmem:[#allocation4 + $0xe8] sm:$0xff]
    %v312 = vld [vmem:[#allocation4 + $0xf0] sm:$0xff]
    %v313 = vld [vmem:[#allocation4 + $0xf8] sm:$0xff]
    %v314 = vld [vmem:[#allocation4 + $0x100] sm:$0xff]
    %v315 = vld [vmem:[#allocation4 + $0x108] sm:$0xff]
    %v316 = vld [vmem:[#allocation4 + $0x110] sm:$0xff]
    %v317 = vld [vmem:[#allocation4 + $0x118] sm:$0xff]
    %v318 = vld [vmem:[#allocation4 + $0x120] sm:$0xff]
    %v319 = vld [vmem:[#allocation4 + $0x128] sm:$0xff]
    %v320 = vld [vmem:[#allocation4 + $0x130] sm:$0xff]
    %v321 = vld [vmem:[#allocation4 + $0x138] sm:$0xff]
    %v322 = vld [vmem:[#allocation4 + $0x140] sm:$0xff]
    %v323 = vld [vmem:[#allocation4 + $0x148] sm:$0xff]
    %v324 = vld [vmem:[#allocation4 + $0x150] sm:$0xff]
    %v325 = vld [vmem:[#allocation4 + $0x158] sm:$0xff]
    %v326 = vld [vmem:[#allocation4 + $0x160] sm:$0xff]
    %v327 = vld [vmem:[#allocation4 + $0x168] sm:$0xff]
    %v328 = vld [vmem:[#allocation4 + $0x170] sm:$0xff]
    %v329 = vld [vmem:[#allocation4 + $0x178] sm:$0xff]
    %v330 = vld [vmem:[#allocation4 + $0x180] sm:$0xff]
    %v331 = vld [vmem:[#allocation4 + $0x188] sm:$0xff]
    %v332 = vld [vmem:[#allocation4 + $0x190] sm:$0xff]
    %v333 = vld [vmem:[#allocation4 + $0x198] sm:$0xff]
    %v334 = vld [vmem:[#allocation4 + $0x1a0] sm:$0xff]
    %v335 = vld [vmem:[#allocation4 + $0x1a8] sm:$0xff]
    %v336 = vld [vmem:[#allocation4 + $0x1b0] sm:$0xff]
    %v337 = vld [vmem:[#allocation4 + $0x1b8] sm:$0xff]
    %v338 = vld [vmem:[#allocation4 + $0x1c0] sm:$0xff]
    %v339 = vld [vmem:[#allocation4 + $0x1c8] sm:$0xff]
    %v340 = vld [vmem:[#allocation4 + $0x1d0] sm:$0xff]
    %v341 = vld [vmem:[#allocation4 + $0x1d8] sm:$0xff]
    %v342 = vld [vmem:[#allocation4 + $0x1e0] sm:$0xff]
    %v343 = vld [vmem:[#allocation4 + $0x1e8] sm:$0xff]
    %v344 = vld [vmem:[#allocation4 + $0x1f0] sm:$0xff]
    %v345 = vld [vmem:[#allocation4 + $0x1f8] sm:$0xff]
    %v346 = vld [vmem:[%s4] sm:$0x3]
    %v348 = vperm.slane %v346, 0
    %v349 = vperm.slane %v346, 1
    %352 = vmatpush.msra.mxu0 %v312
    %353 = vmatpush.msra.mxu0 %v310
    %354 = vmatpush.msra.mxu0 %v308
    %355 = vmatpush.msra.mxu0 %v306
    %356 = vmatpush.msra.mxu0 %v304
    %357 = vmatpush.msra.mxu0 %v302
    %358 = vmatpush.msra.mxu0 %v300
    %359 = vmatpush.msra.mxu0 %v298
    %360 = vmatpush.msra.mxu0 %v296
    %361 = vmatpush.msra.mxu0 %v294
    %362 = vmatpush.msra.mxu0 %v292
    %363 = vmatpush.msra.mxu0 %v290
    %364 = vmatpush.msra.mxu0 %v288
    %365 = vmatpush.msra.mxu0 %v286
    %366 = vmatpush.msra.mxu0 %v284
    %367 = vmatpush.msra.mxu0 %v282
    %368 = vmatmul.f32.gmra.mxu0 %v280
    %v369 = vpop.f32.mrf.mxu0
    %v370 = vadd.f32 %v348, %v369
    %371 = vdwg.mxu0
    %372 = vmatpush.msra.mxu0 %v344
    %373 = vmatpush.msra.mxu0 %v342
    %374 = vmatpush.msra.mxu0 %v340
    %375 = vmatpush.msra.mxu0 %v338
    %376 = vmatpush.msra.mxu0 %v336
    %377 = vmatpush.msra.mxu0 %v334
    %378 = vmatpush.msra.mxu0 %v332
    %379 = vmatpush.msra.mxu0 %v330
    %380 = vmatpush.msra.mxu0 %v328
    %381 = vmatpush.msra.mxu0 %v326
    %382 = vmatpush.msra.mxu0 %v324
    %383 = vmatpush.msra.mxu0 %v322
    %384 = vmatpush.msra.mxu0 %v320
    %385 = vmatpush.msra.mxu0 %v318
    %386 = vmatpush.msra.mxu0 %v316
    %387 = vmatpush.msra.mxu0 %v314
    %388 = vmatmul.f32.gmra.mxu0 %v281
    %v389 = vpop.f32.mrf.mxu0
    %v390 = vadd.f32 %v370, %v389
    %391 = vdwg.mxu0
    %392 = vmatpush.msra.mxu0 %v313
    %393 = vmatpush.msra.mxu0 %v311
    %394 = vmatpush.msra.mxu0 %v309
    %395 = vmatpush.msra.mxu0 %v307
    %396 = vmatpush.msra.mxu0 %v305
    %397 = vmatpush.msra.mxu0 %v303
    %398 = vmatpush.msra.mxu0 %v301
    %399 = vmatpush.msra.mxu0 %v299
    %400 = vmatpush.msra.mxu0 %v297
    %401 = vmatpush.msra.mxu0 %v295
    %402 = vmatpush.msra.mxu0 %v293
    %403 = vmatpush.msra.mxu0 %v291
    %404 = vmatpush.msra.mxu0 %v289
    %405 = vmatpush.msra.mxu0 %v287
    %406 = vmatpush.msra.mxu0 %v285
    %407 = vmatpush.msra.mxu0 %v283
    %408 = vmatmul.f32.gmra.mxu0 %v280
    %v409 = vpop.f32.mrf.mxu0
    %v410 = vadd.f32 %v349, %v409
    %411 = vdwg.mxu0
    %412 = vmatpush.msra.mxu0 %v345
    %413 = vmatpush.msra.mxu0 %v343
    %414 = vmatpush.msra.mxu0 %v341
    %415 = vmatpush.msra.mxu0 %v339
    %416 = vmatpush.msra.mxu0 %v337
    %417 = vmatpush.msra.mxu0 %v335
    %418 = vmatpush.msra.mxu0 %v333
    %419 = vmatpush.msra.mxu0 %v331
    %420 = vmatpush.msra.mxu0 %v329
    %421 = vmatpush.msra.mxu0 %v327
    %422 = vmatpush.msra.mxu0 %v325
    %423 = vmatpush.msra.mxu0 %v323
    %424 = vmatpush.msra.mxu0 %v321
    %425 = vmatpush.msra.mxu0 %v319
    %426 = vmatpush.msra.mxu0 %v317
    %427 = vmatpush.msra.mxu0 %v315
    %428 = vmatmul.f32.gmra.mxu0 %v281
    %v429 = vpop.f32.mrf.mxu0
    %v430 = vadd.f32 %v410, %v429
    %431 = vdwg.mxu0
    %vm432 = vcmp.gt.f32.partialorder %v390, 0.0
    %vm433 = vcmp.gt.f32.partialorder %v430, 0.0
    %v434 = vmul.f32 %v390, 0.01
    %v435 = vmul.f32 %v430, 0.01
    %v436 = vsel %vm432, %v390, %v434
    %v437 = vsel %vm433, %v430, %v435
    %v438 = vld [vmem:[%s5] sm:$0xff]
    %v439 = vld [vmem:[%s5 + $0x8] sm:$0xff]
    %v440 = vld [vmem:[%s5 + $0x10] sm:$0xff]
    %v441 = vld [vmem:[%s5 + $0x18] sm:$0xff]
    %v442 = vld [vmem:[%s5 + $0x20] sm:$0xff]
    %v443 = vld [vmem:[%s5 + $0x28] sm:$0xff]
    %v444 = vld [vmem:[%s5 + $0x30] sm:$0xff]
    %v445 = vld [vmem:[%s5 + $0x38] sm:$0xff]
    %v446 = vld [vmem:[%s5 + $0x40] sm:$0xff]
    %v447 = vld [vmem:[%s5 + $0x48] sm:$0xff]
    %v448 = vld [vmem:[%s5 + $0x50] sm:$0xff]
    %v449 = vld [vmem:[%s5 + $0x58] sm:$0xff]
    %v450 = vld [vmem:[%s5 + $0x60] sm:$0xff]
    %v451 = vld [vmem:[%s5 + $0x68] sm:$0xff]
    %v452 = vld [vmem:[%s5 + $0x70] sm:$0xff]
    %v453 = vld [vmem:[%s5 + $0x78] sm:$0xff]
    %v454 = vld [vmem:[%s5 + $0x80] sm:$0xff]
    %v455 = vld [vmem:[%s5 + $0x88] sm:$0xff]
    %v456 = vld [vmem:[%s5 + $0x90] sm:$0xff]
    %v457 = vld [vmem:[%s5 + $0x98] sm:$0xff]
    %v458 = vld [vmem:[%s5 + $0xa0] sm:$0xff]
    %v459 = vld [vmem:[%s5 + $0xa8] sm:$0xff]
    %v460 = vld [vmem:[%s5 + $0xb0] sm:$0xff]
    %v461 = vld [vmem:[%s5 + $0xb8] sm:$0xff]
    %v462 = vld [vmem:[%s5 + $0xc0] sm:$0xff]
    %v463 = vld [vmem:[%s5 + $0xc8] sm:$0xff]
    %v464 = vld [vmem:[%s5 + $0xd0] sm:$0xff]
    %v465 = vld [vmem:[%s5 + $0xd8] sm:$0xff]
    %v466 = vld [vmem:[%s5 + $0xe0] sm:$0xff]
    %v467 = vld [vmem:[%s5 + $0xe8] sm:$0xff]
    %v468 = vld [vmem:[%s5 + $0xf0] sm:$0xff]
    %v469 = vld [vmem:[%s5 + $0xf8] sm:$0xff]
    %v470 = vld [vmem:[%s6] sm:$0x1]
    %v472 = vperm.slane %v470, 0
    %474 = vmatpush.msra.mxu0 %v453
    %475 = vmatpush.msra.mxu0 %v452
    %476 = vmatpush.msra.mxu0 %v451
    %477 = vmatpush.msra.mxu0 %v450
    %478 = vmatpush.msra.mxu0 %v449
    %479 = vmatpush.msra.mxu0 %v448
    %480 = vmatpush.msra.mxu0 %v447
    %481 = vmatpush.msra.mxu0 %v446
    %482 = vmatpush.msra.mxu0 %v445
    %483 = vmatpush.msra.mxu0 %v444
    %484 = vmatpush.msra.mxu0 %v443
    %485 = vmatpush.msra.mxu0 %v442
    %486 = vmatpush.msra.mxu0 %v441
    %487 = vmatpush.msra.mxu0 %v440
    %488 = vmatpush.msra.mxu0 %v439
    %489 = vmatpush.msra.mxu0 %v438
    %490 = vmatmul.f32.gmra.mxu0 %v436
    %v491 = vpop.f32.mrf.mxu0
    %v492 = vadd.f32 %v472, %v491
    %493 = vdwg.mxu0
    %494 = vmatpush.msra.mxu0 %v469
    %495 = vmatpush.msra.mxu0 %v468
    %496 = vmatpush.msra.mxu0 %v467
    %497 = vmatpush.msra.mxu0 %v466
    %498 = vmatpush.msra.mxu0 %v465
    %499 = vmatpush.msra.mxu0 %v464
    %500 = vmatpush.msra.mxu0 %v463
    %501 = vmatpush.msra.mxu0 %v462
    %502 = vmatpush.msra.mxu0 %v461
    %503 = vmatpush.msra.mxu0 %v460
    %504 = vmatpush.msra.mxu0 %v459
    %505 = vmatpush.msra.mxu0 %v458
    %506 = vmatpush.msra.mxu0 %v457
    %507 = vmatpush.msra.mxu0 %v456
    %508 = vmatpush.msra.mxu0 %v455
    %509 = vmatpush.msra.mxu0 %v454
    %510 = vmatmul.f32.gmra.mxu0 %v437
    %v511 = vpop.f32.mrf.mxu0
    %v512 = vadd.f32 %v492, %v511
    %513 = vdwg.mxu0
    %vm514 = vcmp.gt.f32.partialorder %v512, 0.0
    %v515 = vmul.f32 %v512, 0.01
    %v516 = vsel %vm514, %v512, %v515
    %v517 = vld [vmem:[%s7] sm:$0xff]
    %v518 = vld [vmem:[%s7 + $0x8] sm:$0xff]
    %v519 = vld [vmem:[%s7 + $0x10] sm:$0xff]
    %v520 = vld [vmem:[%s7 + $0x18] sm:$0xff]
    %v521 = vld [vmem:[%s7 + $0x20] sm:$0xff]
    %v522 = vld [vmem:[%s7 + $0x28] sm:$0xff]
    %v523 = vld [vmem:[%s7 + $0x30] sm:$0xff]
    %v524 = vld [vmem:[%s7 + $0x38] sm:$0xff]
    %v525 = vld [vmem:[%s7 + $0x40] sm:$0xff]
    %v526 = vld [vmem:[%s7 + $0x48] sm:$0xff]
    %v527 = vld [vmem:[%s7 + $0x50] sm:$0xff]
    %v528 = vld [vmem:[%s7 + $0x58] sm:$0xff]
    %v529 = vld [vmem:[%s7 + $0x60] sm:$0xff]
    %v530 = vld [vmem:[%s7 + $0x68] sm:$0xff]
    %v531 = vld [vmem:[%s7 + $0x70] sm:$0xff]
    %v532 = vld [vmem:[%s7 + $0x78] sm:$0xff]
    %v533 = vld [vmem:[%s8] sm:$0x1]
    %v535 = vperm.slane %v533, 0
    %537 = vmatpush.msra.mxu0 %v532
    %538 = vmatpush.msra.mxu0 %v531
    %539 = vmatpush.msra.mxu0 %v530
    %540 = vmatpush.msra.mxu0 %v529
    %541 = vmatpush.msra.mxu0 %v528
    %542 = vmatpush.msra.mxu0 %v527
    %543 = vmatpush.msra.mxu0 %v526
    %544 = vmatpush.msra.mxu0 %v525
    %545 = vmatpush.msra.mxu0 %v524
    %546 = vmatpush.msra.mxu0 %v523
    %547 = vmatpush.msra.mxu0 %v522
    %548 = vmatpush.msra.mxu0 %v521
    %549 = vmatpush.msra.mxu0 %v520
    %550 = vmatpush.msra.mxu0 %v519
    %551 = vmatpush.msra.mxu0 %v518
    %552 = vmatpush.msra.mxu0 %v517
    %553 = vmatmul.f32.gmra.mxu0 %v516
    %v554 = vpop.f32.mrf.mxu0
    %v555 = vadd.f32 %v535, %v554
    %556 = vdwg.mxu0
    %vm557 = vcmp.gt.f32.partialorder %v555, 0.0
    %v558 = vmul.f32 %v555, 0.01
    %v559 = vsel %vm557, %v555, %v558
    %v560 = vld [vmem:[%s9] sm:$0xff]
    %v561 = vld [vmem:[%s9 + $0x8] sm:$0xff]
    %v562 = vld [vmem:[%s9 + $0x10] sm:$0xff]
    %v563 = vld [vmem:[%s9 + $0x18] sm:$0xff]
    %v564 = vld [vmem:[%s9 + $0x20] sm:$0xff]
    %v565 = vld [vmem:[%s9 + $0x28] sm:$0xff]
    %v566 = vld [vmem:[%s9 + $0x30] sm:$0xff]
    %v567 = vld [vmem:[%s9 + $0x38] sm:$0xff]
    %v568 = vld [vmem:[%s10] sm:$0x1]
    %v570 = vperm.slane %v568, 0
    %vm572 = vcmask 523264
    %v574 = vsel %vm572, %v559, 0
    %576 = vmatpush.msra.mxu0 0.0
    %577 = vmatpush.msra.mxu0 0.0
    %578 = vmatpush.msra.mxu0 0.0
    %579 = vmatpush.msra.mxu0 0.0
    %580 = vmatpush.msra.mxu0 0.0
    %581 = vmatpush.msra.mxu0 0.0
    %582 = vmatpush.msra.mxu0 0.0
    %583 = vmatpush.msra.mxu0 0.0
    %584 = vmatpush.msra.mxu0 %v567
    %585 = vmatpush.msra.mxu0 %v566
    %586 = vmatpush.msra.mxu0 %v565
    %587 = vmatpush.msra.mxu0 %v564
    %588 = vmatpush.msra.mxu0 %v563
    %589 = vmatpush.msra.mxu0 %v562
    %590 = vmatpush.msra.mxu0 %v561
    %591 = vmatpush.msra.mxu0 %v560
    %592 = vmatmul.f32.gmra.mxu0 %v574
    %v593 = vpop.f32.mrf.mxu0
    %v594 = vadd.f32 %v570, %v593
    %595 = vdwg.mxu0
    %vm596 = vcmask 64512
    %597 = vst.msk [vmem:[%s11] sm:$0xff] %vm596, %v594
    // Predicated region
    $region54: #{actor_pc_forward.1} parent=1 // pred_check
      _
    $region55: #{actor_pc_forward.1} parent=1 // pred_check_branch
      %599 = sbr.rel (0) target = $region57
    $region56: #{actor_pc_forward.1} parent=1 // pred_region
      _
    $region57: #{actor_pc_forward.1} parent=1 // pred_fallthru
      _
    // Predicated region
    $region58: #{actor_pc_forward.1} parent=1 // pred_check
      _
    $region59: #{actor_pc_forward.1} parent=1 // pred_check_branch
      %601 = sbr.rel (0) target = $region61
    $region60: #{actor_pc_forward.1} parent=1 // pred_region
      _
    $region61: #{actor_pc_forward.1} parent=1 // pred_fallthru
      _
    %602 = vsyncpa [#allocation3], 1
    %603 = vsyncpa [#allocation5], 1

</llo_original>
